<compile_context>
chip_gen: v6e
topology: v6e:2x2x1
jax: 0.10.0
libtpu: 0.0.40
codegen_flags: <defaults>
</compile_context>

<pallas_src>
import numpy as np
import jax
import jax.numpy as jnp
from jax import lax
from jax.experimental import pallas as pl
from jax.experimental.pallas import tpu as pltpu

KSIZE = 3
SIGMA = 1.0


def _gaussian_taps(kernel_size=KSIZE, sigma=SIGMA):
    # Matches torch: 1-D gaussian, normalized; 2-D kernel = outer(k, k).
    xs = np.arange(kernel_size, dtype=np.float64) - kernel_size // 2
    k = np.exp(-(xs ** 2) / (2.0 * sigma ** 2))
    k = k / k.sum()
    return tuple(float(v) for v in k)


def _make_kernel(C, H, W, K, pad, taps):
    def kern(x_ref, o_ref, sp_ref):
        # x_ref : VMEM (1, C, H, W)          one batch sample
        # o_ref : VMEM (1, C, H, W)          output sample
        # sp_ref: VMEM (H+2p, W+2p) float32  zero-padded channel-sum plane

        # 1) channel sum, accumulated in f32.
        s = x_ref[0, 0, :, :].astype(jnp.float32)
        for c in range(1, C):
            s = s + x_ref[0, c, :, :].astype(jnp.float32)

        # 2) fused zero padding: zero the scratch, write the interior.
        sp_ref[...] = jnp.zeros_like(sp_ref)
        sp_ref[pad:pad + H, pad:pad + W] = s
        sp = sp_ref[...]

        # 3) separable gaussian: H pass (sublane shifts) then W pass (lane shifts).
        row = taps[0] * sp[0:H, :]
        for t in range(1, K):
            row = row + taps[t] * sp[t:t + H, :]
        out2d = taps[0] * row[:, 0:W]
        for t in range(1, K):
            out2d = out2d + taps[t] * row[:, t:t + W]

        # 4) every output channel gets the same filtered plane.
        o_ref[0, :, :, :] = jnp.broadcast_to(out2d, (C, H, W)).astype(o_ref.dtype)

    return kern


def gaussian_filter(x, kernel_size=KSIZE, sigma=SIGMA):
    N, C, H, W = x.shape
    pad = kernel_size // 2
    taps = _gaussian_taps(kernel_size, sigma)
    kern = _make_kernel(C, H, W, kernel_size, pad, taps)

    return pl.pallas_call(
        kern,
        out_shape=jax.ShapeDtypeStruct((N, C, H, W), x.dtype),
        grid_spec=pltpu.PrefetchScalarGridSpec(
            num_scalar_prefetch=0,
            grid=(N,),  # one full sample per step; N parallel steps feed both v7x TCs
            in_specs=[pl.BlockSpec((1, C, H, W), lambda n: (n, 0, 0, 0))],
            out_specs=pl.BlockSpec((1, C, H, W), lambda n: (n, 0, 0, 0)),
            scratch_shapes=[pltpu.VMEM((H + 2 * pad, W + 2 * pad), jnp.float32)],
        ),
        compiler_params=pltpu.CompilerParams(dimension_semantics=("parallel",)),
    )(x)


if __name__ == "__main__":
    key = jax.random.PRNGKey(0)
    x = jax.random.normal(key, (2, 4, 16, 16), dtype=jnp.float32)

    y = jax.block_until_ready(gaussian_filter(x))

    # Reference: XLA conv with the same expanded weight (cross-correlation, like F.conv2d).
    C = x.shape[1]
    k1d = jnp.asarray(_gaussian_taps(), dtype=jnp.float32)
    w2d = jnp.outer(k1d, k1d)
    w_full = jnp.broadcast_to(w2d[None, None, :, :], (C, C, KSIZE, KSIZE))
    ref = lax.conv_general_dilated(
        x, w_full, window_strides=(1, 1), padding="SAME",
        dimension_numbers=("NCHW", "OIHW", "NCHW"))

    assert y.shape == ref.shape and y.dtype == ref.dtype
    assert jnp.allclose(y, ref, atol=1e-5, rtol=1e-5)
    print("KERNEL_OK")
</pallas_src>

<mosaic_0001>
module attributes {stable_mosaic.version = 11 : i64} {
  func.func @kern(%arg0: i32, %arg1: memref<1x4x16x16xf32, #tpu.memory_space<vmem>>, %arg2: memref<1x4x16x16xf32, #tpu.memory_space<vmem>>, %arg3: memref<18x18xf32, #tpu.memory_space<vmem>>) attributes {dimension_semantics = [#tpu.dimension_semantics<parallel>], iteration_bounds = array<i64: 2>, scalar_prefetch = 0 : i64, scratch_operands = 1 : i64, tpu.core_type = #tpu.core_type<tc>, window_params = [{transform_indices = @transform_0, window_bounds = array<i64: 1, 4, 16, 16>}, {transform_indices = @transform_1, window_bounds = array<i64: 1, 4, 16, 16>}]} {
    %c0 = arith.constant 0 : index
    %c0_0 = arith.constant 0 : index
    %c0_1 = arith.constant 0 : index
    %c0_2 = arith.constant 0 : index
    %0 = vector.load %arg1[%c0, %c0_0, %c0_1, %c0_2] : memref<1x4x16x16xf32, #tpu.memory_space<vmem>>, vector<1x1x16x16xf32>
    %1 = vector.shape_cast %0 : vector<1x1x16x16xf32> to vector<16x16xf32>
    %c0_3 = arith.constant 0 : index
    %c1 = arith.constant 1 : index
    %c0_4 = arith.constant 0 : index
    %c0_5 = arith.constant 0 : index
    %2 = vector.load %arg1[%c0_3, %c1, %c0_4, %c0_5] : memref<1x4x16x16xf32, #tpu.memory_space<vmem>>, vector<1x1x16x16xf32>
    %3 = vector.shape_cast %2 : vector<1x1x16x16xf32> to vector<16x16xf32>
    %4 = arith.addf %1, %3 : vector<16x16xf32>
    %c0_6 = arith.constant 0 : index
    %c2 = arith.constant 2 : index
    %c0_7 = arith.constant 0 : index
    %c0_8 = arith.constant 0 : index
    %5 = vector.load %arg1[%c0_6, %c2, %c0_7, %c0_8] : memref<1x4x16x16xf32, #tpu.memory_space<vmem>>, vector<1x1x16x16xf32>
    %6 = vector.shape_cast %5 : vector<1x1x16x16xf32> to vector<16x16xf32>
    %7 = arith.addf %4, %6 : vector<16x16xf32>
    %c0_9 = arith.constant 0 : index
    %c3 = arith.constant 3 : index
    %c0_10 = arith.constant 0 : index
    %c0_11 = arith.constant 0 : index
    %8 = vector.load %arg1[%c0_9, %c3, %c0_10, %c0_11] : memref<1x4x16x16xf32, #tpu.memory_space<vmem>>, vector<1x1x16x16xf32>
    %9 = vector.shape_cast %8 : vector<1x1x16x16xf32> to vector<16x16xf32>
    %10 = arith.addf %7, %9 : vector<16x16xf32>
    %cst = arith.constant 0.000000e+00 : f32
    %11 = vector.broadcast %cst : f32 to vector<18x18xf32>
    %c0_12 = arith.constant 0 : index
    %c0_13 = arith.constant 0 : index
    %12 = vector.load %arg3[%c0_12, %c0_13] : memref<18x18xf32, #tpu.memory_space<vmem>>, vector<18x18xf32>
    tpu.vector_store %arg3[%c0_12, %c0_13], %11 {strides = array<i32>} : memref<18x18xf32, #tpu.memory_space<vmem>>, vector<18x18xf32>,
    %c1_14 = arith.constant 1 : index
    %c1_15 = arith.constant 1 : index
    %13 = vector.load %arg3[%c1_14, %c1_15] : memref<18x18xf32, #tpu.memory_space<vmem>>, vector<16x16xf32>
    tpu.vector_store %arg3[%c1_14, %c1_15], %10 {strides = array<i32>} : memref<18x18xf32, #tpu.memory_space<vmem>>, vector<16x16xf32>,
    %c0_16 = arith.constant 0 : index
    %c0_17 = arith.constant 0 : index
    %14 = vector.load %arg3[%c0_16, %c0_17] : memref<18x18xf32, #tpu.memory_space<vmem>>, vector<18x18xf32>
    %15 = vector.extract_strided_slice %14 {offsets = [0, 0], sizes = [16, 18], strides = [1, 1]} : vector<18x18xf32> to vector<16x18xf32>
    %cst_18 = arith.constant 0.274068624 : f32
    %16 = vector.broadcast %cst_18 : f32 to vector<16x18xf32>
    %17 = arith.mulf %16, %15 : vector<16x18xf32>
    %18 = vector.extract_strided_slice %14 {offsets = [1, 0], sizes = [16, 18], strides = [1, 1]} : vector<18x18xf32> to vector<16x18xf32>
    %cst_19 = arith.constant 0.451862752 : f32
    %19 = vector.broadcast %cst_19 : f32 to vector<16x18xf32>
    %20 = arith.mulf %19, %18 : vector<16x18xf32>
    %21 = arith.addf %17, %20 : vector<16x18xf32>
    %22 = vector.extract_strided_slice %14 {offsets = [2, 0], sizes = [16, 18], strides = [1, 1]} : vector<18x18xf32> to vector<16x18xf32>
    %cst_20 = arith.constant 0.274068624 : f32
    %23 = vector.broadcast %cst_20 : f32 to vector<16x18xf32>
    %24 = arith.mulf %23, %22 : vector<16x18xf32>
    %25 = arith.addf %21, %24 : vector<16x18xf32>
    %26 = vector.extract_strided_slice %25 {offsets = [0, 0], sizes = [16, 16], strides = [1, 1]} : vector<16x18xf32> to vector<16x16xf32>
    %cst_21 = arith.constant 0.274068624 : f32
    %27 = vector.broadcast %cst_21 : f32 to vector<16x16xf32>
    %28 = arith.mulf %27, %26 : vector<16x16xf32>
    %29 = vector.extract_strided_slice %25 {offsets = [0, 1], sizes = [16, 16], strides = [1, 1]} : vector<16x18xf32> to vector<16x16xf32>
    %cst_22 = arith.constant 0.451862752 : f32
    %30 = vector.broadcast %cst_22 : f32 to vector<16x16xf32>
    %31 = arith.mulf %30, %29 : vector<16x16xf32>
    %32 = arith.addf %28, %31 : vector<16x16xf32>
    %33 = vector.extract_strided_slice %25 {offsets = [0, 2], sizes = [16, 16], strides = [1, 1]} : vector<16x18xf32> to vector<16x16xf32>
    %cst_23 = arith.constant 0.274068624 : f32
    %34 = vector.broadcast %cst_23 : f32 to vector<16x16xf32>
    %35 = arith.mulf %34, %33 : vector<16x16xf32>
    %36 = arith.addf %32, %35 : vector<16x16xf32>
    %37 = vector.shape_cast %36 : vector<16x16xf32> to vector<1x16x16xf32>
    %38 = vector.broadcast %37 : vector<1x16x16xf32> to vector<4x16x16xf32>
    %c0_24 = arith.constant 0 : index
    %c0_25 = arith.constant 0 : index
    %c0_26 = arith.constant 0 : index
    %c0_27 = arith.constant 0 : index
    %39 = vector.load %arg2[%c0_24, %c0_25, %c0_26, %c0_27] : memref<1x4x16x16xf32, #tpu.memory_space<vmem>>, vector<1x4x16x16xf32>
    %40 = vector.shape_cast %39 : vector<1x4x16x16xf32> to vector<4x16x16xf32>
    %41 = vector.shape_cast %38 : vector<4x16x16xf32> to vector<1x4x16x16xf32>
    tpu.vector_store %arg2[%c0_24, %c0_25, %c0_26, %c0_27], %41 {strides = array<i32>} : memref<1x4x16x16xf32, #tpu.memory_space<vmem>>, vector<1x4x16x16xf32>,
    return
  }
  func.func @transform_0(%arg0: i32) -> (i32, i32, i32, i32) {
    %c0_i32 = arith.constant 0 : i32
    %c0_i32_0 = arith.constant 0 : i32
    %c0_i32_1 = arith.constant 0 : i32
    %c0_i32_2 = arith.constant 0 : i32
    return %arg0, %c0_i32, %c0_i32_0, %c0_i32_1 : i32, i32, i32, i32
  }
  func.func @transform_1(%arg0: i32) -> (i32, i32, i32, i32) {
    %c0_i32 = arith.constant 0 : i32
    %c0_i32_0 = arith.constant 0 : i32
    %c0_i32_1 = arith.constant 0 : i32
    %c0_i32_2 = arith.constant 0 : i32
    return %arg0, %c0_i32, %c0_i32_0, %c0_i32_1 : i32, i32, i32, i32
  }
}

</mosaic_0001>

<llo_original>
// kernel: tpu_custom_call.1
$region0: #{tpu_custom_call.1}
  #allocation0 [shape = 'u32[]', space=smem, size = 0x4, offset = 0x4, fixed_abs, tag = 'smem constant byte address 0x4 - core index']
  #allocation1 [shape = 'u32[144,128]{1,0:T(1,128)}', space=vmem, size = 0x12000, scoped, tag = 'internal scratch']
  #allocation2 [shape = 'f32[18,18]{1,0:T(8,128)}', space=vmem, size = 0x3000, scoped, tag = 'scratch operand']
  %s0 = inlined_call_operand.hbm [shape: f32[2,4,16,16], index: 0, kind: input, shape index: {}]
  %s1 = inlined_call_operand.hbm [shape: f32[2,4,16,16], index: 1, kind: output, shape index: {}]
  %s2 = sld [smem:[#allocation0]]
  $region41: #{tpu_custom_call.1} parent=0
    _
  %s4 = ssub.s32 1, %s2
  %s5 = scalar_select 0, %s4, %s2
  $region1: #{tpu_custom_call.1} parent=0
    #allocation3 [shape = 'u8[65536]{0}', space=vmem, size = 0x10000, scoped, tag = 'input window, operand 0']
    #allocation4 [shape = 's32[2]{0}', space=sflag, size = 0x8, scoped, tag = 'scoped memory for tpu_custom_call.1']
    #allocation5 [shape = 's32[2]{0}', space=sflag, size = 0x8, scoped, tag = 'scoped memory for tpu_custom_call.1']
    #allocation6 [shape = 'u8[65536]{0}', space=vmem, size = 0x10000, scoped, tag = 'output window, operand 0']
    %6 = vsyncpa [#allocation4], 0
    %s7 = scalar_lea.sflag [#allocation4], 1
    %8 = vsyncpa %s7, 0
    %9 = vsyncpa [#allocation5], 0
    %s10 = scalar_lea.sflag [#allocation5], 1
    %11 = vsyncpa %s10, 0
    loop: start=0, step=1, limit=4
    $region2: #{tpu_custom_call.1} parent=1 // loop_pre_header
      _
    $region3: #{tpu_custom_call.1} parent=1 // loop_header
      %s13 = sphi 0, %s17
      %p14 = scmp.ge.s32.totalorder %s13, 4
      %s23 = sphi 0, %s25
      %s26 = sphi 0, %s23
      %s27 = sphi 0, %s26
      %s43 = sphi 0, %s27
      %s49 = sphi 0, %s51
      %s52 = sphi 0, %s49
      %s53 = sphi 0, %s52
      %s69 = sphi 0, %s53
    $region4: #{tpu_custom_call.1} parent=1 // loop_header_branch
      %16 = sbr.rel (%p14) target = $region8
    $region5: #{tpu_custom_call.1} parent=1 // loop_body
      %s18 = ssub.s32 %s13, 1
      %s19 = ssub.s32 %s13, 2
      %s20 = sadd.s32 %s13, 1
      %s21 = ssub.s32 %s13, %s20
      %p22 = scmp.eq.s32.totalorder %s21, 0
      %s24 = sadd.s32 %s23, 1
      %s25 = scalar_select %p22, %s23, %s24
      %p28 = pneg %p22
      %p29 = scmp.eq.s32.totalorder %s13, 1
      %p30 = por %p28, %p29
      %p31 = scmp.ne.s32.totalorder %s23, %s26
      %p32 = scmp.eq.s32.totalorder %s13, 0
      %p33 = por %p31, %p32
      %p34 = scmp.ne.s32.totalorder %s23, %s26
      %p35 = scmp.eq.s32.totalorder %s18, 1
      %p36 = por %p34, %p35
      %p37 = scmp.ne.s32.totalorder %s26, %s27
      %p38 = scmp.eq.s32.totalorder %s18, 0
      %p39 = por %p37, %p38
      %p40 = scmp.ne.s32.totalorder %s26, %s27
      %p41 = scmp.eq.s32.totalorder %s19, 1
      %p42 = por %p40, %p41
      %p44 = scmp.ne.s32.totalorder %s27, %s43
      %p45 = scmp.eq.s32.totalorder %s19, 0
      %p46 = por %p44, %p45
      %s47 = ssub.s32 %s13, %s20
      %p48 = scmp.eq.s32.totalorder %s47, 0
      %s50 = sadd.s32 %s49, 1
      %s51 = scalar_select %p48, %s49, %s50
      %p54 = pneg %p48
      %p55 = scmp.eq.s32.totalorder %s13, 1
      %p56 = por %p54, %p55
      %p57 = scmp.ne.s32.totalorder %s49, %s52
      %p58 = scmp.eq.s32.totalorder %s13, 0
      %p59 = por %p57, %p58
      %p60 = scmp.ne.s32.totalorder %s49, %s52
      %p61 = scmp.eq.s32.totalorder %s18, 1
      %p62 = por %p60, %p61
      %p63 = scmp.ne.s32.totalorder %s52, %s53
      %p64 = scmp.eq.s32.totalorder %s18, 0
      %p65 = por %p63, %p64
      %p66 = scmp.ne.s32.totalorder %s52, %s53
      %p67 = scmp.eq.s32.totalorder %s19, 1
      %p68 = por %p66, %p67
      %p70 = scmp.ne.s32.totalorder %s53, %s69
      %p71 = scmp.eq.s32.totalorder %s19, 0
      %p72 = por %p70, %p71
      %p73 = scmp.le.s32.totalorder 1, %s13
      %p74 = scmp.lt.s32.totalorder %s13, 3
      %p75 = pnand %p73, %p74
      %p76 = pneg %p75
      // Predicated region
      $region9: #{tpu_custom_call.1} parent=5 // pred_check
        _
      $region10: #{tpu_custom_call.1} parent=5 // pred_check_branch
        %78 = sbr.rel (%p75) target = $region12
      $region11: #{tpu_custom_call.1} parent=5 // pred_region
        %s79 = ssub.s32 %s13, 1
      $region12: #{tpu_custom_call.1} parent=5 // pred_fallthru
        _
      %p80 = scmp.lt.s32.totalorder %s13, 2
      // Predicated region
      $region13: #{tpu_custom_call.1} parent=5 // pred_check
        %p81 = pneg %p80
      $region14: #{tpu_custom_call.1} parent=5 // pred_check_branch
        %83 = sbr.rel (%p81) target = $region16
      $region15: #{tpu_custom_call.1} parent=5 // pred_region
        // Predicated region
        $region17: #{tpu_custom_call.1} parent=15 // pred_check
          %p84 = pneg %p33
        $region18: #{tpu_custom_call.1} parent=15 // pred_check_branch
          %86 = sbr.rel (%p84) target = $region20
        $region19: #{tpu_custom_call.1} parent=15 // pred_region
          %s87 = sand.u32 %s23, 1
          %s88 = scalar_lea.sflag [#allocation4], %s87
          %s89 = sand.u32 %s23, 1
          %s90 = smul.addr %s89, 64
          %s91 = scalar_lea.vmem [#allocation3], %s90
          %s93 = ssub.s32 1024, 1024
          %94 = vsyncadd %s88, %s93
          %s95 = smul.addr %s13, 8
          %s96 = smul.addr %s95, 128
          %s97 = scalar_lea.hbm %s0, %s96
          %s98 = sshll.u32 %s91, 4
          %s99 = int_to_ptr.vmem [resolvable:$true] %s98
          %104 = dma.hbm_to_vmem [thread:$0]  %s97, 1024, %s99, %s88, 128, 128, 8
        $region20: #{tpu_custom_call.1} parent=15 // pred_fallthru
          _
      $region16: #{tpu_custom_call.1} parent=5 // pred_fallthru
        _
      %p105 = scmp.le.s32.totalorder 1, %s13
      %p106 = scmp.lt.s32.totalorder %s13, 3
      %p107 = pnand %p105, %p106
      %p108 = pneg %p107
      // Predicated region
      $region21: #{tpu_custom_call.1} parent=5 // pred_check
        _
      $region22: #{tpu_custom_call.1} parent=5 // pred_check_branch
        %110 = sbr.rel (%p107) target = $region24
      $region23: #{tpu_custom_call.1} parent=5 // pred_region
        %s111 = ssub.s32 %s13, 1
        %s112 = sand.u32 %s26, 1
        %s113 = scalar_lea.sflag [#allocation4], %s112
        %s114 = sand.u32 %s26, 1
        %s115 = smul.addr %s114, 64
        %s116 = scalar_lea.vmem [#allocation3], %s115
        // Predicated region
        $region25: #{tpu_custom_call.1} parent=23 // pred_check
          %p117 = pneg %p39
        $region26: #{tpu_custom_call.1} parent=23 // pred_check_branch
          %119 = sbr.rel (%p117) target = $region28
        $region27: #{tpu_custom_call.1} parent=23 // pred_region
          %120 = dma.done %s113, 1024
        $region28: #{tpu_custom_call.1} parent=23 // pred_fallthru
          _
        %s121 = sand.u32 %s26, 1
        %s122 = scalar_lea.sflag [#allocation4], %s121
        %s123 = sand.u32 %s26, 1
        %s124 = smul.addr %s123, 64
        %s125 = scalar_lea.vmem [#allocation3], %s124
        %p126 = pneg %p39
        %p127 = pneg %p36
        %p128 = pneg %p65
        %p129 = pneg %p62
        %s130 = sand.u32 %s52, 1
        %s131 = scalar_lea.sflag [#allocation5], %s130
        %s132 = sand.u32 %s52, 1
        %s133 = smul.addr %s132, 64
        %s134 = scalar_lea.vmem [#allocation6], %s133
        %v135 = vld [vmem:[%s116] sm:$0xff]
        %v136 = vld [vmem:[%s116 + $0x8] sm:$0xff]
        %s137 = scalar_lea.vmem %s116, 16 [#allocation3]
        %v138 = vld [vmem:[%s137] sm:$0xff]
        %v139 = vld [vmem:[%s137 + $0x8] sm:$0xff]
        %v140 = vadd.f32 %v135, %v138
        %v141 = vadd.f32 %v136, %v139
        %s142 = scalar_lea.vmem %s116, 32 [#allocation3]
        %v143 = vld [vmem:[%s142] sm:$0xff]
        %v144 = vld [vmem:[%s142 + $0x8] sm:$0xff]
        %v145 = vadd.f32 %v140, %v143
        %v146 = vadd.f32 %v141, %v144
        %s147 = scalar_lea.vmem %s116, 48 [#allocation3]
        %v148 = vld [vmem:[%s147] sm:$0xff]
        %v149 = vld [vmem:[%s147 + $0x8] sm:$0xff]
        %v150 = vadd.f32 %v145, %v148
        %v151 = vadd.f32 %v146, %v149
        %vm152 = vcmask 146432
        %153 = vst.msk [vmem:[#allocation2] sm:$0xff] %vm152, 0.0
        %154 = vst.msk [vmem:[#allocation2 + $0x8] sm:$0xff] %vm152, 0.0
        %vm155 = vcmask 140288
        %156 = vst.msk [vmem:[#allocation2 + $0x10] sm:$0x3] %vm155, 0.0
        %159 = vrot.lane.b32.xlu0 %v150, 1
        %v160 = vpop.permute.xlu0 %159
        %161 = vrot.lane.b32.xlu0 %v151, 1
        %v162 = vpop.permute.xlu0 %161
        %vm165 = vcmask 138248
        %166 = vst.msk [vmem:[#allocation2 + $0x1] sm:$0xff] %vm165, %v160
        %167 = vst.msk [vmem:[#allocation2 + $0x9] sm:$0xff] %vm165, %v162
        %v168 = vld [vmem:[#allocation2] sm:$0xff]
        %v169 = vld [vmem:[#allocation2 + $0x8] sm:$0xff]
        %v170 = vld [vmem:[#allocation2 + $0x10] sm:$0x3]
        %v171 = vmul.f32 %v168, 0.27406862
        %v172 = vmul.f32 %v169, 0.27406862
        %v173 = vmul.f32 %v168, 0.45186275
        %v174 = vmul.f32 %v169, 0.45186275
        %v175 = vmul.f32 %v170, 0.45186275
        %vm179 = vcmask 1046528
        %v180 = vrot.slane %v173, 1
        %v181 = vrot.slane %v174, 1
        %v182 = vsel %vm179, %v180, %v181
        %v183 = vrot.slane %v175, 1
        %v184 = vsel %vm179, %v181, %v183
        %v187 = vadd.f32 %v171, %v182
        %v188 = vadd.f32 %v172, %v184
        %v189 = vmul.f32 %v170, 0.27406862
        %vm193 = vcmask 1045504
        %v194 = vrot.slane %v171, 2
        %v195 = vrot.slane %v172, 2
        %v196 = vsel %vm193, %v194, %v195
        %v197 = vrot.slane %v189, 2
        %v198 = vsel %vm193, %v195, %v197
        %v201 = vadd.f32 %v187, %v196
        %v202 = vadd.f32 %v188, %v198
        %v203 = vmul.f32 %v201, 0.27406862
        %v204 = vmul.f32 %v202, 0.27406862
        %v205 = vmul.f32 %v201, 0.45186275
        %v206 = vmul.f32 %v202, 0.45186275
        %209 = vrot.lane.b32.xlu0 %v205, 127
        %v210 = vpop.permute.xlu0 %209
        %211 = vrot.lane.b32.xlu0 %v206, 127
        %v212 = vpop.permute.xlu0 %211
        %v215 = vadd.f32 %v203, %v210
        %v216 = vadd.f32 %v204, %v212
        %219 = vrot.lane.b32.xlu0 %v203, 126
        %v220 = vpop.permute.xlu0 %219
        %221 = vrot.lane.b32.xlu0 %v204, 126
        %v222 = vpop.permute.xlu0 %221
        %v225 = vadd.f32 %v215, %v220
        %v226 = vadd.f32 %v216, %v222
        %vm227 = vcmask 130048
        %228 = vst.msk [vmem:[%s134] sm:$0xff] %vm227, %v225
        %229 = vst.msk [vmem:[%s134 + $0x8] sm:$0xff] %vm227, %v226
        %230 = vst.msk [vmem:[%s134 + $0x10] sm:$0xff] %vm227, %v225
        %231 = vst.msk [vmem:[%s134 + $0x18] sm:$0xff] %vm227, %v226
        %232 = vst.msk [vmem:[%s134 + $0x20] sm:$0xff] %vm227, %v225
        %233 = vst.msk [vmem:[%s134 + $0x28] sm:$0xff] %vm227, %v226
        %234 = vst.msk [vmem:[%s134 + $0x30] sm:$0xff] %vm227, %v225
        %235 = vst.msk [vmem:[%s134 + $0x38] sm:$0xff] %vm227, %v226
        %s236 = sand.u32 %s52, 1
        %s237 = scalar_lea.sflag [#allocation5], %s236
        %s238 = sand.u32 %s52, 1
        %s239 = smul.addr %s238, 64
        %s240 = scalar_lea.vmem [#allocation6], %s239
        // Predicated region
        $region29: #{tpu_custom_call.1} parent=23 // pred_check
          %p241 = pneg %p62
        $region30: #{tpu_custom_call.1} parent=23 // pred_check_branch
          %243 = sbr.rel (%p241) target = $region32
        $region31: #{tpu_custom_call.1} parent=23 // pred_region
          %s245 = ssub.s32 1024, 1024
          %246 = vsyncadd %s237, %s245
          %s247 = smul.addr %s18, 8
          %s248 = smul.addr %s247, 128
          %s249 = scalar_lea.hbm %s1, %s248
          %s250 = sshll.u32 %s240, 4
          %s251 = int_to_ptr.vmem [resolvable:$true] %s250
          %256 = dma.vmem_to_hbm [thread:$0]  %s251, 1024, %s249, %s237, 128, 128, 8
        $region32: #{tpu_custom_call.1} parent=23 // pred_fallthru
          _
      $region24: #{tpu_custom_call.1} parent=5 // pred_fallthru
        _
      %p257 = scmp.le.s32.totalorder 2, %s13
      // Predicated region
      $region33: #{tpu_custom_call.1} parent=5 // pred_check
        %p258 = pneg %p257
      $region34: #{tpu_custom_call.1} parent=5 // pred_check_branch
        %260 = sbr.rel (%p258) target = $region36
      $region35: #{tpu_custom_call.1} parent=5 // pred_region
        %s261 = ssub.s32 %s13, 2
        // Predicated region
        $region37: #{tpu_custom_call.1} parent=35 // pred_check
          %p262 = pneg %p68
        $region38: #{tpu_custom_call.1} parent=35 // pred_check_branch
          %264 = sbr.rel (%p262) target = $region40
        $region39: #{tpu_custom_call.1} parent=35 // pred_region
          %s265 = sand.u32 %s53, 1
          %s266 = scalar_lea.sflag [#allocation5], %s265
          %s267 = sand.u32 %s53, 1
          %s268 = smul.addr %s267, 64
          %s269 = scalar_lea.vmem [#allocation6], %s268
          %270 = dma.done %s266, 1024
        $region40: #{tpu_custom_call.1} parent=35 // pred_fallthru
          _
      $region36: #{tpu_custom_call.1} parent=5 // pred_fallthru
        _
    $region6: #{tpu_custom_call.1} parent=1 // loop_footer
      %s17 = sadd.s32 1, %s13
    $region7: #{tpu_custom_call.1} parent=1 // loop_footer_branch
      %12 = sbr.rel target = $region3
    $region8: #{tpu_custom_call.1} parent=1 // loop_exit
      _
    %271 = vsyncpa [#allocation4], 1
    %s272 = scalar_lea.sflag [#allocation4], 1
    %273 = vsyncpa %s272, 1
    %274 = vsyncpa [#allocation5], 1
    %s275 = scalar_lea.sflag [#allocation5], 1
    %276 = vsyncpa %s275, 1

</llo_original>
